<compile_context>
chip_gen: v6e
topology: v6e:2x2x1
jax: 0.10.0
libtpu: 0.0.40
codegen_flags: <defaults>
</compile_context>

<pallas_src>
import jax
import jax.numpy as jnp
from jax import lax
from jax.experimental import pallas as pl
from jax.experimental.pallas import tpu as pltpu


# --------------------------- VMEM budgeting ---------------------------------

_VMEM_CACHE = None


def _vmem_budget_and_limit():
    """(block-sizing budget, vmem_limit_bytes) derived from the chip's VMEM."""
    global _VMEM_CACHE
    if _VMEM_CACHE is None:
        try:
            cap = int(pltpu.get_tpu_info().vmem_capacity_bytes)
        except Exception:
            cap = 64 * 1024 * 1024          # conservative (v7x-sized) fallback
        limit = min((cap * 3) // 4, 100 * 1024 * 1024)
        budget = max(limit - 12 * 1024 * 1024, 8 * 1024 * 1024)
        _VMEM_CACHE = (budget, limit)
    return _VMEM_CACHE


def _largest_divisor(n, cap, mult=1):
    """Largest divisor of n that is <= cap and a multiple of `mult` (or n)."""
    cap = max(1, min(n, int(cap)))
    for c in range(cap, 0, -1):
        if n % c == 0 and (c % mult == 0 or c == n):
            return c
    return n


def _row_block(n, per_row_bytes, weight_bytes, budget):
    avail = max(budget - weight_bytes, 8 * per_row_bytes)
    cap = max(8, avail // (2 * per_row_bytes))       # double-buffered
    mult = 16 if n % 16 == 0 else 8                   # bf16-friendly sublanes
    return _largest_divisor(n, cap, mult)


def _time_block(t, b, h, budget):
    # Per-timestep VMEM, double-buffered: 2 bf16 gate streams (4H wide each)
    # + 2 bf16 hidden output streams (H wide each).
    per_t = 2 * (2 * b * 4 * h * 2 + 2 * b * h * 2)   # = 40 * b * h bytes
    cap = max(1, budget // max(per_t, 1))
    # TODO(synk): for prime/odd T this divisor search can collapse to t_blk=1;
    # a ragged last block with pl.when masking would be needed (never zero-pad
    # time -- sigmoid(0)=0.5 would corrupt the carry).
    return _largest_divisor(t, cap, mult=1)


# ----------------------------- Pallas kernels ------------------------------

def _gates_x1_kernel(x_ref, w_ref, b_ref, g_ref):
    """gates_x = x @ W_ih_cat + b   (layer 0: single f32 input, bf16 out)."""
    g_ref[...] = (jnp.dot(x_ref[...].astype(w_ref.dtype), w_ref[...],
                          preferred_element_type=jnp.float32)
                  + b_ref[...]).astype(g_ref.dtype)


def _gates_x2_kernel(xf_ref, xb_ref, wf_ref, wb_ref, b_ref, g_ref):
    """gates_x = h_fwd_prev @ W_f + h_bwd_prev @ W_b + b (layers > 0, bf16)."""
    g_ref[...] = (jnp.dot(xf_ref[...], wf_ref[...],
                          preferred_element_type=jnp.float32)
                  + jnp.dot(xb_ref[...], wb_ref[...],
                            preferred_element_type=jnp.float32)
                  + b_ref[...]).astype(g_ref.dtype)


def _bilstm_rec_kernel(gf_ref, gb_ref, whf_ref, whb_ref,
                       hf_ref, hb_ref, hlf_ref, hlb_ref,
                       hf_sc, hb_sc, cf_sc, cb_sc):
    """Fused bidirectional recurrence over one time block.

    gf_ref : (t_blk, B, 4H) bf16  gates-from-x, forward columns, time block j
    gb_ref : (t_blk, B, 4H) bf16  gates-from-x, backward columns, block nt-1-j
    whf/whb: (H, 4H)        bf16  per-direction recurrent weights
    hf_ref : (t_blk, B, H)  bf16  forward hidden out (time index t)
    hb_ref : (t_blk, B, H)  bf16  backward hidden out (time index T-1-t)
    hlf/hlb: (B, H)         bf16  h_fwd(T-1) / h_bwd(T-1) (accumulator blocks)
    *_sc   : (B, H)         f32   per-direction h / c carries (persist).
    Packed gate order per direction: [i, f, o, g].
    """
    t_blk = gf_ref.shape[0]
    B, H = hf_sc.shape
    nt = pl.num_programs(0)

    @pl.when(pl.program_id(0) == 0)
    def _():
        hf_sc[...] = jnp.zeros_like(hf_sc)
        hb_sc[...] = jnp.zeros_like(hb_sc)
        cf_sc[...] = jnp.zeros_like(cf_sc)
        cb_sc[...] = jnp.zeros_like(cb_sc)

    # Static lane mask, hoisted out of the recurrence: tanh on the last H
    # ("g") lanes, sigmoid on the first 3H ("i,f,o") lanes.
    is_g = lax.broadcasted_iota(jnp.int32, (B, 4 * H), 1) >= 3 * H

    def act(g):
        return jnp.where(is_g, jnp.tanh(g), jax.nn.sigmoid(g))

    def step(s, carry):
        s_b = t_blk - 1 - s
        # Two independent (B,H)@(H,4H) recurrent matmuls (fwd / bwd).
        gr_f = jnp.dot(hf_sc[...].astype(whf_ref.dtype), whf_ref[...],
                       preferred_element_type=jnp.float32)
        gr_b = jnp.dot(hb_sc[...].astype(whb_ref.dtype), whb_ref[...],
                       preferred_element_type=jnp.float32)
        a_f = act(gf_ref[s].astype(jnp.float32) + gr_f)
        a_b = act(gb_ref[s_b].astype(jnp.float32) + gr_b)
        c_f = a_f[:, H:2 * H] * cf_sc[...] + a_f[:, :H] * a_f[:, 3 * H:]
        c_b = a_b[:, H:2 * H] * cb_sc[...] + a_b[:, :H] * a_b[:, 3 * H:]
        h_f = a_f[:, 2 * H:3 * H] * jnp.tanh(c_f)
        h_b = a_b[:, 2 * H:3 * H] * jnp.tanh(c_b)
        cf_sc[...] = c_f
        cb_sc[...] = c_b
        hf_sc[...] = h_f
        hb_sc[...] = h_b
        hf_ref[s] = h_f.astype(hf_ref.dtype)
        hb_ref[s_b] = h_b.astype(hb_ref.dtype)
        return carry

    unroll = 4 if t_blk % 4 == 0 else (2 if t_blk % 2 == 0 else 1)
    lax.fori_loop(0, t_blk, step, 0, unroll=unroll)

    @pl.when(pl.program_id(0) == 0)
    def _():
        # h_bwd(T-1) is produced at global recurrence step 0 (this block's
        # first step) and already sits at hb_ref[t_blk - 1] in VMEM.
        hlb_ref[...] = hb_ref[t_blk - 1]

    @pl.when(pl.program_id(0) == nt - 1)
    def _():
        hlf_ref[...] = hf_sc[...].astype(hlf_ref.dtype)


def _fc_kernel(hf_ref, hb_ref, wf_ref, wb_ref, b_ref, o_ref):
    """logits = h_fwd_last @ Wf + h_bwd_last @ Wb + b (output padded to 128)."""
    o_ref[...] = (jnp.dot(hf_ref[...], wf_ref[...],
                          preferred_element_type=jnp.float32)
                  + jnp.dot(hb_ref[...], wb_ref[...],
                            preferred_element_type=jnp.float32)
                  + b_ref[...])


# ------------------------------ wrappers -----------------------------------

def _compute_gates(xs, ws, b):
    """One big MXU GEMM producing packed bf16 gates-from-x for all timesteps.

    xs: list of (N, D_i) inputs; ws: matching (D_i, 8H) bf16; b: (1, 8H) f32.
    Returns (N, 8H) bf16.
    """
    budget, limit = _vmem_budget_and_limit()
    n = xs[0].shape[0]
    g_cols = ws[0].shape[1]
    in_bytes = sum(x.shape[1] * x.dtype.itemsize for x in xs)
    out_bytes = g_cols * 2                       # bf16 output
    w_bytes = sum(int(w.size) * w.dtype.itemsize for w in ws) + int(b.size) * 4
    r_blk = _row_block(n, in_bytes + out_bytes, w_bytes, budget)
    grid = (n // r_blk,)

    in_specs = [pl.BlockSpec((r_blk, x.shape[1]), lambda r: (r, 0)) for x in xs]
    in_specs += [pl.BlockSpec((w.shape[0], g_cols), lambda r: (0, 0)) for w in ws]
    in_specs.append(pl.BlockSpec((1, g_cols), lambda r: (0, 0)))

    kernel = _gates_x1_kernel if len(xs) == 1 else _gates_x2_kernel
    return pl.pallas_call(
        kernel,
        out_shape=jax.ShapeDtypeStruct((n, g_cols), jnp.bfloat16),
        grid=grid,
        in_specs=in_specs,
        out_specs=pl.BlockSpec((r_blk, g_cols), lambda r: (r, 0)),
        compiler_params=pltpu.CompilerParams(
            dimension_semantics=("parallel",),
            vmem_limit_bytes=limit),
    )(*xs, *ws, b)


def _run_bilstm_layer(gates, w_hh_f, w_hh_b, hidden_size):
    """Fused bidirectional recurrence. gates: (T, B, 8H) bf16.

    Returns (h_fwd, h_bwd, h_fwd_last, h_bwd_last); h_bwd is already in
    natural time order; the *_last outputs are h at time T-1 per direction.
    """
    budget, limit = _vmem_budget_and_limit()
    T, B, _ = gates.shape
    H = hidden_size
    t_blk = _time_block(T, B, H, budget)
    nt = T // t_blk

    return pl.pallas_call(
        _bilstm_rec_kernel,
        out_shape=(jax.ShapeDtypeStruct((T, B, H), jnp.bfloat16),
                   jax.ShapeDtypeStruct((T, B, H), jnp.bfloat16),
                   jax.ShapeDtypeStruct((B, H), jnp.bfloat16),
                   jax.ShapeDtypeStruct((B, H), jnp.bfloat16)),
        grid=(nt,),
        in_specs=[
            # Column-sliced gate streams: fwd columns [0:4H], bwd [4H:8H].
            pl.BlockSpec((t_blk, B, 4 * H), lambda j: (j, 0, 0)),
            pl.BlockSpec((t_blk, B, 4 * H), lambda j: (nt - 1 - j, 0, 1)),
            pl.BlockSpec((H, 4 * H), lambda j: (0, 0)),   # W_hh fwd (resident)
            pl.BlockSpec((H, 4 * H), lambda j: (0, 0)),   # W_hh bwd (resident)
        ],
        out_specs=[
            pl.BlockSpec((t_blk, B, H), lambda j: (j, 0, 0)),
            pl.BlockSpec((t_blk, B, H), lambda j: (nt - 1 - j, 0, 0)),
            pl.BlockSpec((B, H), lambda j: (0, 0)),       # h_fwd(T-1)
            pl.BlockSpec((B, H), lambda j: (0, 0)),       # h_bwd(T-1)
        ],
        scratch_shapes=[pltpu.VMEM((B, H), jnp.float32),  # h_fwd carry
                        pltpu.VMEM((B, H), jnp.float32),  # h_bwd carry
                        pltpu.VMEM((B, H), jnp.float32),  # c_fwd carry
                        pltpu.VMEM((B, H), jnp.float32)], # c_bwd carry
        compiler_params=pltpu.CompilerParams(
            dimension_semantics=("arbitrary",),
            vmem_limit_bytes=limit),
    )(gates, gates, w_hh_f, w_hh_b)


def _run_fc(h_f_last, h_b_last, fc_wf, fc_wb, fc_b):
    _, limit = _vmem_budget_and_limit()
    B = h_f_last.shape[0]
    c_pad = fc_wf.shape[1]
    return pl.pallas_call(
        _fc_kernel,
        out_shape=jax.ShapeDtypeStruct((B, c_pad), jnp.float32),
        compiler_params=pltpu.CompilerParams(vmem_limit_bytes=limit),
    )(h_f_last, h_b_last, fc_wf, fc_wb, fc_b)


# ------------------------------ parameters ----------------------------------

def _pack_gate_cols(w_pt):
    """(4H, D) PyTorch layout, gate rows [i,f,g,o] -> (D, 4H), cols [i,f,o,g]."""
    H = w_pt.shape[0] // 4
    i, f, g, o = w_pt[:H], w_pt[H:2 * H], w_pt[2 * H:3 * H], w_pt[3 * H:]
    return jnp.concatenate([i, f, o, g], axis=0).T


def _pack_gate_bias(b_ih, b_hh):
    b = b_ih + b_hh
    H = b.shape[0] // 4
    i, f, g, o = b[:H], b[H:2 * H], b[2 * H:3 * H], b[3 * H:]
    return jnp.concatenate([i, f, o, g]).reshape(1, -1)


def init_params(key, vocab, input_size, hidden_size, num_layers, num_classes):
    H = hidden_size
    params = {}

    key, k_emb = jax.random.split(key)
    # TODO(synk): frozen GloVe table stand-in (same shape/role, random values).
    params['emb'] = jax.random.normal(k_emb, (vocab, input_size), jnp.float32)

    bound = 1.0 / float(H) ** 0.5

    def u(k, shape):
        return jax.random.uniform(k, shape, jnp.float32, -bound, bound)

    for l in range(num_layers):
        d_in = input_size if l == 0 else 2 * H
        packed = {}
        for tag in ('fwd', 'bwd'):
            key, k1, k2, k3, k4 = jax.random.split(key, 5)
            w_ih_pt = u(k1, (4 * H, d_in))     # PyTorch layout (4H, D_in)
            w_hh_pt = u(k2, (4 * H, H))
            b_ih = u(k3, (4 * H,))
            b_hh = u(k4, (4 * H,))
            packed[tag] = (_pack_gate_cols(w_ih_pt),      # (d_in, 4H)
                           _pack_gate_cols(w_hh_pt),      # (H, 4H)
                           _pack_gate_bias(b_ih, b_hh))   # (1, 4H)

        # Columns packed [fwd gates 4H | bwd gates 4H].
        w_ih_cat = jnp.concatenate([packed['fwd'][0], packed['bwd'][0]],
                                   axis=1).astype(jnp.bfloat16)   # (d_in, 8H)
        if l == 0:
            params['w_ih_0'] = w_ih_cat
        else:
            params[f'w_ih_f_{l}'] = w_ih_cat[:H]    # rows multiplying h_fwd_prev
            params[f'w_ih_b_{l}'] = w_ih_cat[H:]    # rows multiplying h_bwd_prev
        params[f'w_hh_f_{l}'] = packed['fwd'][1].astype(jnp.bfloat16)  # (H, 4H)
        params[f'w_hh_b_{l}'] = packed['bwd'][1].astype(jnp.bfloat16)  # (H, 4H)
        params[f'b_{l}'] = jnp.concatenate(
            [packed['fwd'][2], packed['bwd'][2]], axis=1)              # (1, 8H)

    key, kw, kb = jax.random.split(key, 3)
    fb = 1.0 / float(2 * H) ** 0.5
    c_pad = max(128, -(-num_classes // 128) * 128)            # lane-dense FC out
    fc_w = jax.random.uniform(kw, (2 * H, num_classes), jnp.float32, -fb, fb)
    fc_b = jax.random.uniform(kb, (num_classes,), jnp.float32, -fb, fb)
    fc_w = jnp.pad(fc_w, ((0, 0), (0, c_pad - num_classes)))
    params['fc_wf'] = fc_w[:H].astype(jnp.bfloat16)           # pre-split fwd half
    params['fc_wb'] = fc_w[H:].astype(jnp.bfloat16)           # pre-split bwd half
    params['fc_b'] = jnp.pad(fc_b, (0, c_pad - num_classes)).reshape(1, c_pad)
    return params


# ------------------------------ forward -------------------------------------

def lstm_model_forward(params, tokens, num_layers, hidden_size, num_classes):
    H = hidden_size
    B0, T = tokens.shape

    # Embedding lookup (frozen table) - gather glue kept in plain JAX.
    x = jnp.take(params['emb'], tokens, axis=0)            # (B0, T, E)

    # Pad batch to a multiple of 8 sublanes (rows are independent in an LSTM).
    B = max(8, -(-B0 // 8) * 8)
    if B != B0:
        x = jnp.pad(x, ((0, B - B0), (0, 0), (0, 0)))

    # Single transpose: whole model runs time-major from here on.
    x = jnp.transpose(x, (1, 0, 2))                         # (T, B, E)

    h_f = h_b = hl_f = hl_b = None
    for l in range(num_layers):
        b = params[f'b_{l}']
        if l == 0:
            gates2d = _compute_gates([x.reshape(T * B, -1)],
                                     [params['w_ih_0']], b)
        else:
            gates2d = _compute_gates(
                [h_f.reshape(T * B, H), h_b.reshape(T * B, H)],
                [params[f'w_ih_f_{l}'], params[f'w_ih_b_{l}']], b)
        gates = gates2d.reshape(T, B, 8 * H)                # bf16
        h_f, h_b, hl_f, hl_b = _run_bilstm_layer(
            gates, params[f'w_hh_f_{l}'], params[f'w_hh_b_{l}'], H)

    # out[:, -1, :] == [h_fwd(T-1) | h_bwd(T-1)]; last-step states come
    # straight out of the recurrent kernel (no HBM slice round-trip).
    logits_pad = _run_fc(hl_f, hl_b, params['fc_wf'], params['fc_wb'],
                         params['fc_b'])                    # (B, 128) f32
    return logits_pad[:B0, :num_classes]


if __name__ == "__main__":
    VOCAB = 64
    INPUT_SIZE = 32     # embedding dim (GloVe dim stand-in)
    HIDDEN = 32
    NUM_LAYERS = 2
    NUM_CLASSES = 5
    B, T = 2, 8

    key = jax.random.PRNGKey(0)
    key, k_tok = jax.random.split(key)
    tokens = jax.random.randint(k_tok, (B, T), 0, VOCAB, dtype=jnp.int32)

    params = init_params(key, VOCAB, INPUT_SIZE, HIDDEN, NUM_LAYERS, NUM_CLASSES)

    out = lstm_model_forward(params, tokens, NUM_LAYERS, HIDDEN, NUM_CLASSES)
    out = jax.block_until_ready(out)
    assert out.shape == (B, NUM_CLASSES)
    assert bool(jnp.all(jnp.isfinite(out)))
    print("KERNEL_OK")
</pallas_src>

<mosaic_0001>
module attributes {stable_mosaic.version = 11 : i64} {
  func.func @_gates_x1_kernel(%arg0: i32, %arg1: memref<64x32xf32, #tpu.memory_space<vmem>>, %arg2: memref<32x256xbf16, #tpu.memory_space<vmem>>, %arg3: memref<1x256xf32, #tpu.memory_space<vmem>>, %arg4: memref<64x256xbf16, #tpu.memory_space<vmem>>) attributes {dimension_semantics = [#tpu.dimension_semantics<parallel>], iteration_bounds = array<i64: 1>, scalar_prefetch = 0 : i64, scratch_operands = 0 : i64, tpu.core_type = #tpu.core_type<tc>, window_params = [{transform_indices = @transform_0, window_bounds = array<i64: 64, 32>}, {pipeline_mode = #tpu.pipeline_mode<synchronous>, transform_indices = @transform_1, window_bounds = array<i64: 32, 256>}, {pipeline_mode = #tpu.pipeline_mode<synchronous>, transform_indices = @transform_2, window_bounds = array<i64: 1, 256>}, {transform_indices = @transform_3, window_bounds = array<i64: 64, 256>}]} {
    %c0 = arith.constant 0 : index
    %c0_0 = arith.constant 0 : index
    %0 = vector.load %arg1[%c0, %c0_0] : memref<64x32xf32, #tpu.memory_space<vmem>>, vector<64x32xf32>
    %1 = arith.truncf %0 : vector<64x32xf32> to vector<64x32xbf16>
    %c0_1 = arith.constant 0 : index
    %c0_2 = arith.constant 0 : index
    %2 = vector.load %arg2[%c0_1, %c0_2] : memref<32x256xbf16, #tpu.memory_space<vmem>>, vector<32x256xbf16>
    %cst = arith.constant dense<0.000000e+00> : vector<64x256xf32>
    %3 = tpu.matmul %1, %2, %cst {dimension_numbers = #tpu.dot_dimension_numbers<[1], [0], [0], [1], [0, 0, 1, 1], [], []>} : vector<64x32xbf16>, vector<32x256xbf16>, vector<64x256xf32> -> vector<64x256xf32>
    %c0_3 = arith.constant 0 : index
    %c0_4 = arith.constant 0 : index
    %4 = vector.load %arg3[%c0_3, %c0_4] : memref<1x256xf32, #tpu.memory_space<vmem>>, vector<1x256xf32>
    %5 = vector.broadcast %4 : vector<1x256xf32> to vector<64x256xf32>
    %6 = arith.addf %3, %5 : vector<64x256xf32>
    %7 = arith.truncf %6 : vector<64x256xf32> to vector<64x256xbf16>
    %c0_5 = arith.constant 0 : index
    %c0_6 = arith.constant 0 : index
    %8 = vector.load %arg4[%c0_5, %c0_6] : memref<64x256xbf16, #tpu.memory_space<vmem>>, vector<64x256xbf16>
    tpu.vector_store %arg4[%c0_5, %c0_6], %7 {strides = array<i32>} : memref<64x256xbf16, #tpu.memory_space<vmem>>, vector<64x256xbf16>,
    return
  }
  func.func @transform_0(%arg0: i32) -> (i32, i32) {
    %c0_i32 = arith.constant 0 : i32
    %c0_i32_0 = arith.constant 0 : i32
    return %arg0, %c0_i32 : i32, i32
  }
  func.func @transform_1(%arg0: i32) -> (i32, i32) {
    %c0_i32 = arith.constant 0 : i32
    %c0_i32_0 = arith.constant 0 : i32
    %c0_i32_1 = arith.constant 0 : i32
    return %c0_i32, %c0_i32_0 : i32, i32
  }
  func.func @transform_2(%arg0: i32) -> (i32, i32) {
    %c0_i32 = arith.constant 0 : i32
    %c0_i32_0 = arith.constant 0 : i32
    %c0_i32_1 = arith.constant 0 : i32
    return %c0_i32, %c0_i32_0 : i32, i32
  }
  func.func @transform_3(%arg0: i32) -> (i32, i32) {
    %c0_i32 = arith.constant 0 : i32
    %c0_i32_0 = arith.constant 0 : i32
    return %arg0, %c0_i32 : i32, i32
  }
}

</mosaic_0001>

<llo_original>
// kernel: tpu_custom_call.1
$region0: #{tpu_custom_call.1}
  #allocation0 [shape = 'u32[]', space=smem, size = 0x4, offset = 0x4, fixed_abs, tag = 'smem constant byte address 0x4 - core index']
  #allocation1 [shape = 'u32[144,128]{1,0:T(1,128)}', space=vmem, size = 0x12000, scoped, tag = 'internal scratch']
  %s0 = inlined_call_operand.vmem [shape: f32[64,32], index: 0, kind: input, shape index: {}]
  %s1 = inlined_call_operand.vmem [shape: bf16[32,256], index: 1, kind: input, shape index: {}]
  %s2 = inlined_call_operand.vmem [shape: f32[1,256], index: 2, kind: input, shape index: {}]
  %s3 = inlined_call_operand.hbm [shape: bf16[64,256], index: 3, kind: output, shape index: {}]
  %s4 = sld [smem:[#allocation0]]
  $region22: #{tpu_custom_call.1} parent=0
    _
  %s6 = ssub.s32 1, %s4
  %s7 = scalar_select 0, %s6, %s4
  $region1: #{tpu_custom_call.1} parent=0
    #allocation2 [shape = 'u8[32768]{0}', space=vmem, size = 0x8000, scoped, tag = 'output window, operand 0, single buffered']
    #allocation3 [shape = 's32[1]{0}', space=sflag, size = 0x4, scoped, tag = 'scoped memory for tpu_custom_call.1']
    %8 = vsyncpa [#allocation3], 0
    // Predicated region
    $region2: #{tpu_custom_call.1} parent=1 // pred_check
      _
    $region3: #{tpu_custom_call.1} parent=1 // pred_check_branch
      %10 = sbr.rel (0) target = $region5
    $region4: #{tpu_custom_call.1} parent=1 // pred_region
      _
    $region5: #{tpu_custom_call.1} parent=1 // pred_fallthru
      _
    // Predicated region
    $region6: #{tpu_custom_call.1} parent=1 // pred_check
      _
    $region7: #{tpu_custom_call.1} parent=1 // pred_check_branch
      %12 = sbr.rel (0) target = $region9
    $region8: #{tpu_custom_call.1} parent=1 // pred_region
      _
    $region9: #{tpu_custom_call.1} parent=1 // pred_fallthru
      _
    // Predicated region
    $region10: #{tpu_custom_call.1} parent=1 // pred_check
      _
    $region11: #{tpu_custom_call.1} parent=1 // pred_check_branch
      %14 = sbr.rel (0) target = $region13
    $region12: #{tpu_custom_call.1} parent=1 // pred_region
      _
    $region13: #{tpu_custom_call.1} parent=1 // pred_fallthru
      _
    %v16 = vld [vmem:[%s0] sm:$0xff]
    %v17 = vld [vmem:[%s0 + $0x8] sm:$0xff]
    %v18 = vld [vmem:[%s0 + $0x10] sm:$0xff]
    %v19 = vld [vmem:[%s0 + $0x18] sm:$0xff]
    %v20 = vld [vmem:[%s0 + $0x20] sm:$0xff]
    %v21 = vld [vmem:[%s0 + $0x28] sm:$0xff]
    %v22 = vld [vmem:[%s0 + $0x30] sm:$0xff]
    %v23 = vld [vmem:[%s0 + $0x38] sm:$0xff]
    %v24 = vpack.c.bf16 %v17, %v16
    %v25 = vpack.c.bf16 %v19, %v18
    %v26 = vpack.c.bf16 %v21, %v20
    %v27 = vpack.c.bf16 %v23, %v22
    %v28 = vld [vmem:[%s1] sm:$0xff]
    %v29 = vld [vmem:[%s1 + $0x8] sm:$0xff]
    %v30 = vld [vmem:[%s1 + $0x10] sm:$0xff]
    %v31 = vld [vmem:[%s1 + $0x18] sm:$0xff]
    %v32 = vld [vmem:[%s2] sm:$0x3]
    %v34 = vlaneseq
    %v35 = vshrl.u32 %v34, 7
    %v36 = vsub.s32 0, %v35
    %v37 = vrot.slane %v32, %v36
    %v38 = vlaneseq
    %v39 = vshrl.u32 %v38, 7
    %v40 = vsub.s32 1, %v39
    %v41 = vrot.slane %v32, %v40
    %v48 = vunpack.c.l.b16 %v28
    %v49 = vunpack.c.h.b16 %v28
    %v50 = vunpack.c.l.b16 %v29
    %v51 = vunpack.c.h.b16 %v29
    %v52 = vunpack.c.l.b16 %v30
    %v53 = vunpack.c.h.b16 %v30
    %v54 = vunpack.c.l.b16 %v31
    %v55 = vunpack.c.h.b16 %v31
    %v56 = vpack.c.b16 %v50, %v48
    %v57 = vpack.c.b16 %v51, %v49
    %v58 = vpack.c.b16 %v54, %v52
    %v59 = vpack.c.b16 %v55, %v53
    %vm64 = vcmask 261120
    %v66 = vsel %vm64, %v24, 0
    %v69 = vsel %vm64, %v25, 0
    %v72 = vsel %vm64, %v26, 0
    %v75 = vsel %vm64, %v27, 0
    %77 = vmatprep.subr.bf16.mxu0 0
    %78 = vmatpush1.bf16.msra.mxu0 0
    %79 = vmatprep.subr.bf16.mxu0 0
    %80 = vmatpush1.bf16.msra.mxu0 0
    %81 = vmatprep.subr.bf16.mxu0 0
    %82 = vmatpush1.bf16.msra.mxu0 0
    %83 = vmatprep.subr.bf16.mxu0 0
    %84 = vmatpush1.bf16.msra.mxu0 0
    %85 = vmatprep.subr.bf16.mxu0 0
    %86 = vmatpush1.bf16.msra.mxu0 0
    %87 = vmatprep.subr.bf16.mxu0 0
    %88 = vmatpush1.bf16.msra.mxu0 0
    %89 = vmatprep.subr.bf16.mxu0 %v59
    %90 = vmatpush1.bf16.msra.mxu0 %v58
    %91 = vmatprep.subr.bf16.mxu0 %v57
    %92 = vmatpush1.bf16.msra.mxu0 %v56
    %93 = vmatprep.subr.bf16.mxu0 0
    %94 = vmatpush2.bf16.msra.mxu0 0
    %95 = vmatprep.subr.bf16.mxu0 0
    %96 = vmatpush2.bf16.msra.mxu0 0
    %97 = vmatprep.subr.bf16.mxu0 0
    %98 = vmatpush2.bf16.msra.mxu0 0
    %99 = vmatprep.subr.bf16.mxu0 0
    %100 = vmatpush2.bf16.msra.mxu0 0
    %101 = vmatprep.subr.bf16.mxu0 0
    %102 = vmatpush2.bf16.msra.mxu0 0
    %103 = vmatprep.subr.bf16.mxu0 0
    %104 = vmatpush2.bf16.msra.mxu0 0
    %105 = vmatprep.subr.bf16.mxu0 0
    %106 = vmatpush2.bf16.msra.mxu0 0
    %107 = vmatprep.subr.bf16.mxu0 0
    %108 = vmatpush2.bf16.msra.mxu0 0
    %109 = vmatprep.mubr.bf16.mxu0 0
    %110 = vmatmul.mubr.bf16.gmra.mxu0 %v66
    %v111 = vpop.f32.mrf.mxu0
    %v112 = vadd.f32 %v37, %v111
    %v113 = vpop.f32.mrf.mxu0
    %v114 = vadd.f32 %v41, %v113
    %v115 = vpop.f32.mrf.mxu0
    %v116 = vadd.f32 %v37, %v115
    %v117 = vpop.f32.mrf.mxu0
    %v118 = vadd.f32 %v41, %v117
    %119 = vmatprep.mubr.bf16.mxu0 0
    %120 = vmatmul.mubr.bf16.gmra.mxu0 %v69
    %v121 = vpop.f32.mrf.mxu0
    %v122 = vadd.f32 %v37, %v121
    %v123 = vpop.f32.mrf.mxu0
    %v124 = vadd.f32 %v41, %v123
    %v125 = vpop.f32.mrf.mxu0
    %v126 = vadd.f32 %v37, %v125
    %v127 = vpop.f32.mrf.mxu0
    %v128 = vadd.f32 %v41, %v127
    %129 = vmatprep.mubr.bf16.mxu0 0
    %130 = vmatmul.mubr.bf16.gmra.mxu0 %v72
    %v131 = vpop.f32.mrf.mxu0
    %v132 = vadd.f32 %v37, %v131
    %v133 = vpop.f32.mrf.mxu0
    %v134 = vadd.f32 %v41, %v133
    %v135 = vpop.f32.mrf.mxu0
    %v136 = vadd.f32 %v37, %v135
    %v137 = vpop.f32.mrf.mxu0
    %v138 = vadd.f32 %v41, %v137
    %139 = vmatprep.mubr.bf16.mxu0 0
    %140 = vmatmul.mubr.bf16.gmra.mxu0 %v75
    %v141 = vpop.f32.mrf.mxu0
    %v142 = vadd.f32 %v37, %v141
    %v143 = vpop.f32.mrf.mxu0
    %v144 = vadd.f32 %v41, %v143
    %v145 = vpop.f32.mrf.mxu0
    %v146 = vadd.f32 %v37, %v145
    %v147 = vpop.f32.mrf.mxu0
    %v148 = vadd.f32 %v41, %v147
    %149 = vdwg.mxu0
    %v150 = vpack.c.bf16 %v116, %v112
    %v151 = vpack.c.bf16 %v118, %v114
    %v152 = vpack.c.bf16 %v126, %v122
    %v153 = vpack.c.bf16 %v128, %v124
    %v154 = vpack.c.bf16 %v136, %v132
    %v155 = vpack.c.bf16 %v138, %v134
    %v156 = vpack.c.bf16 %v146, %v142
    %v157 = vpack.c.bf16 %v148, %v144
    %v166 = vunpack.c.l.b16 %v150
    %v167 = vunpack.c.l.b16 %v151
    %v168 = vunpack.c.h.b16 %v150
    %v169 = vunpack.c.h.b16 %v151
    %v170 = vunpack.c.l.b16 %v152
    %v171 = vunpack.c.l.b16 %v153
    %v172 = vunpack.c.h.b16 %v152
    %v173 = vunpack.c.h.b16 %v153
    %v174 = vunpack.c.l.b16 %v154
    %v175 = vunpack.c.l.b16 %v155
    %v176 = vunpack.c.h.b16 %v154
    %v177 = vunpack.c.h.b16 %v155
    %v178 = vunpack.c.l.b16 %v156
    %v179 = vunpack.c.l.b16 %v157
    %v180 = vunpack.c.h.b16 %v156
    %v181 = vunpack.c.h.b16 %v157
    %v182 = vpack.c.b16 %v167, %v166
    %v183 = vpack.c.b16 %v169, %v168
    %v184 = vpack.c.b16 %v171, %v170
    %v185 = vpack.c.b16 %v173, %v172
    %v186 = vpack.c.b16 %v175, %v174
    %v187 = vpack.c.b16 %v177, %v176
    %v188 = vpack.c.b16 %v179, %v178
    %v189 = vpack.c.b16 %v181, %v180
    %198 = vst [vmem:[#allocation2] sm:$0xff] %v182
    %199 = vst [vmem:[#allocation2 + $0x8] sm:$0xff] %v183
    %200 = vst [vmem:[#allocation2 + $0x10] sm:$0xff] %v184
    %201 = vst [vmem:[#allocation2 + $0x18] sm:$0xff] %v185
    %202 = vst [vmem:[#allocation2 + $0x20] sm:$0xff] %v186
    %203 = vst [vmem:[#allocation2 + $0x28] sm:$0xff] %v187
    %204 = vst [vmem:[#allocation2 + $0x30] sm:$0xff] %v188
    %205 = vst [vmem:[#allocation2 + $0x38] sm:$0xff] %v189
    // Predicated region
    $region14: #{tpu_custom_call.1} parent=1 // pred_check
      _
    $region15: #{tpu_custom_call.1} parent=1 // pred_check_branch
      %207 = sbr.rel (0) target = $region17
    $region16: #{tpu_custom_call.1} parent=1 // pred_region
      %s209 = ssub.s32 1024, 1024
      %210 = vsyncadd [#allocation3], %s209
      %s211 = sshll.u32 [#allocation2], 4
      %s212 = int_to_ptr.vmem [resolvable:$true] %s211
      %217 = dma.vmem_to_hbm [thread:$0]  %s212, 1024, %s3, [#allocation3], 128, 128, 8
    $region17: #{tpu_custom_call.1} parent=1 // pred_fallthru
      _
    // Predicated region
    $region18: #{tpu_custom_call.1} parent=1 // pred_check
      _
    $region19: #{tpu_custom_call.1} parent=1 // pred_check_branch
      %219 = sbr.rel (0) target = $region21
    $region20: #{tpu_custom_call.1} parent=1 // pred_region
      %220 = dma.done [#allocation3], 1024
    $region21: #{tpu_custom_call.1} parent=1 // pred_fallthru
      _
    %221 = vsyncpa [#allocation3], 1

</llo_original>
